<compile_context>
chip_gen: v7x
topology: tpu7x:2x2x1
jax: 0.10.0
libtpu: 0.0.40
codegen_flags: <defaults>
</compile_context>

<pallas_src>
import functools

import jax
import jax.numpy as jnp
from jax.experimental import pallas as pl
from jax.experimental.pallas import tpu as pltpu

_LANES = 128
_SUBLANES = 8


def _round_up(x, m):
    return ((x + m - 1) // m) * m


def _vmem_capacity_bytes():
    """Per-core VMEM capacity; falls back to the smallest current gen (v7x)."""
    try:
        return int(pltpu.get_tpu_info().vmem_capacity_bytes)
    except Exception:
        return 64 * 1024 * 1024


# ----------------------------------------------------------------------------
# Kernels
# ----------------------------------------------------------------------------
def _rmsnorm_kernel(x_ref, g_ref, o_ref, *, eps_sq):
    """Single-pass path: full dim resident per row tile."""
    x = x_ref[...].astype(jnp.float32)            # (tm, dim)
    g = g_ref[...]                                # (1, dim) f32 = (gamma + 1) * sqrt(dim)
    sumsq = jnp.sum(x * x, axis=-1, keepdims=True)
    # 1 / max(sqrt(sumsq), eps) == rsqrt(max(sumsq, eps^2)), eps = 1e-12.
    inv = jax.lax.rsqrt(jnp.maximum(sumsq, eps_sq))
    o_ref[...] = (x * inv * g).astype(o_ref.dtype)


def _sumsq_inv_kernel(x_ref, inv_ref, acc_ref, *, eps_sq):
    """Wide-dim pass 1: accumulate per-row sum(x^2) over dim tiles, finalize inv."""
    j = pl.program_id(1)

    @pl.when(j == 0)
    def _():
        acc_ref[...] = jnp.zeros_like(acc_ref)

    x = x_ref[...].astype(jnp.float32)            # (tm, td)
    acc_ref[...] += jnp.sum(x * x, axis=-1, keepdims=True)

    @pl.when(j == pl.num_programs(1) - 1)
    def _():
        inv_ref[...] = jax.lax.rsqrt(jnp.maximum(acc_ref[...], eps_sq))


def _apply_kernel(x_ref, inv_ref, g_ref, o_ref):
    """Wide-dim pass 2: elementwise x * inv * g."""
    x = x_ref[...].astype(jnp.float32)
    o_ref[...] = (x * inv_ref[...] * g_ref[...]).astype(o_ref.dtype)


# ----------------------------------------------------------------------------
# Tiling heuristics
# ----------------------------------------------------------------------------
def _pick_block_rows(rows, per_row_bytes, budget_bytes):
    """Largest sublane-aligned row tile within the VMEM budget, while keeping
    at least ~4 grid steps when rows permit (DMA overlap + v7x megacore)."""
    br = budget_bytes // max(per_row_bytes, 1)
    rows_rounded = max(_SUBLANES, _round_up(rows, _SUBLANES))
    steps_cap = _round_up(-(-rows // 4), _SUBLANES)     # round_up(cdiv(rows, 4), 8)
    br = min(br, 2048, rows_rounded, steps_cap)
    br = max((br // _SUBLANES) * _SUBLANES, _SUBLANES)
    return int(br)


# ----------------------------------------------------------------------------
# Wrapper
# ----------------------------------------------------------------------------
def rmsnorm(x, gamma, *, block_rows=None, block_dim=None,
            vmem_limit_bytes=None, input_buffers=2):
    """x: (..., dim); gamma: (dim,). Returns same shape/dtype as x."""
    orig_shape = x.shape
    dim = orig_shape[-1]
    assert gamma.shape == (dim,)

    x2d = x.reshape(-1, dim)
    rows = x2d.shape[0]
    itemsize = jnp.dtype(x.dtype).itemsize

    # Generation-aware VMEM sizing: ~56 MiB limit on v7x (64 MiB), capped at
    # 96 MiB on v5e/v6e (128 MiB). Tile budget ~= half the limit (covers the
    # double-buffered in/out tiles plus the f32 working copy).
    vmem_cap = _vmem_capacity_bytes()
    if vmem_limit_bytes is None:
        vmem_limit_bytes = min((vmem_cap * 7) // 8, 96 * 1024 * 1024)
    tile_budget = vmem_limit_bytes // 2

    eps_sq = 1e-24   # (1e-12)^2, exact fold of F.normalize's eps into rsqrt.

    # Fold the RMSNorm scale and the (+1) into gamma once, host-side.
    g_eff = (gamma.astype(jnp.float32) + 1.0) * (float(dim) ** 0.5)

    # Estimated VMEM bytes per row of a full-dim tile:
    #   2x-buffered input + output in native dtype (4*itemsize) + f32 working
    #   set (~8 B/elem).
    dim128 = _round_up(dim, _LANES)
    per_row128 = dim128 * (4 * itemsize + 8)

    needs_split = (block_dim is not None and block_dim < dim128) or \
                  (_SUBLANES * per_row128 > tile_budget)

    if not needs_split:
        bd = dim128
        dim_p = dim128
    else:
        if block_dim is None:
            bd = tile_budget // (_SUBLANES * (4 * itemsize + 8))
            bd = max(_LANES, (bd // _LANES) * _LANES)
        else:
            bd = max(_LANES, _round_up(block_dim, _LANES))
        bd = min(bd, dim128)
        dim_p = _round_up(dim, bd)        # bd always divides dim_p

    # Lane-dense layout: pad channels with zeros to the tiled width. Zeros do
    # not change sum(x^2) and their outputs are zero (discarded by the slice).
    if dim_p != dim:
        x2d = jnp.pad(x2d, ((0, 0), (0, dim_p - dim)))
        g_eff = jnp.pad(g_eff, ((0, dim_p - dim),))
    g2d = g_eff.reshape(1, dim_p)

    if not needs_split:
        if block_rows is None:
            block_rows = _pick_block_rows(rows, dim_p * (4 * itemsize + 8),
                                          tile_budget)
        x_spec_kwargs = {}
        if input_buffers != 2:
            # Only sweep this on v7x if a profile shows exposed per-step DMA.
            x_spec_kwargs = dict(pipeline_mode=pl.Buffered(input_buffers))

        out2d = pl.pallas_call(
            functools.partial(_rmsnorm_kernel, eps_sq=eps_sq),
            out_shape=jax.ShapeDtypeStruct((rows, dim_p), x.dtype),
            grid_spec=pltpu.PrefetchScalarGridSpec(
                num_scalar_prefetch=0,
                grid=(pl.cdiv(rows, block_rows),),
                in_specs=[
                    pl.BlockSpec((block_rows, dim_p), lambda i: (i, 0),
                                 **x_spec_kwargs),
                    pl.BlockSpec((1, dim_p), lambda i: (0, 0)),   # gamma: resident
                ],
                out_specs=pl.BlockSpec((block_rows, dim_p), lambda i: (i, 0)),
            ),
            compiler_params=pltpu.CompilerParams(
                dimension_semantics=("parallel",),
                vmem_limit_bytes=vmem_limit_bytes,
            ),
        )(x2d, g2d)
    else:
        # Two-pass, dim-tiled fallback for very wide rows (or forced block_dim).
        per_row_split = bd * (4 * itemsize + 8)
        if block_rows is None:
            block_rows = _pick_block_rows(rows, per_row_split, tile_budget)
        n_row = pl.cdiv(rows, block_rows)
        n_dim = dim_p // bd

        # Pass 1: per-row inverse norm (accumulate over dim tiles).
        inv = pl.pallas_call(
            functools.partial(_sumsq_inv_kernel, eps_sq=eps_sq),
            out_shape=jax.ShapeDtypeStruct((rows, 1), jnp.float32),
            grid_spec=pltpu.PrefetchScalarGridSpec(
                num_scalar_prefetch=0,
                grid=(n_row, n_dim),
                in_specs=[pl.BlockSpec((block_rows, bd), lambda i, j: (i, j))],
                out_specs=pl.BlockSpec((block_rows, 1), lambda i, j: (i, 0)),
                scratch_shapes=[pltpu.VMEM((block_rows, 1), jnp.float32)],
            ),
            compiler_params=pltpu.CompilerParams(
                dimension_semantics=("parallel", "arbitrary"),
                vmem_limit_bytes=vmem_limit_bytes,
            ),
        )(x2d)

        # Pass 2: elementwise apply.
        out2d = pl.pallas_call(
            _apply_kernel,
            out_shape=jax.ShapeDtypeStruct((rows, dim_p), x.dtype),
            grid_spec=pltpu.PrefetchScalarGridSpec(
                num_scalar_prefetch=0,
                grid=(n_row, n_dim),
                in_specs=[
                    pl.BlockSpec((block_rows, bd), lambda i, j: (i, j)),
                    pl.BlockSpec((block_rows, 1), lambda i, j: (i, 0)),
                    pl.BlockSpec((1, bd), lambda i, j: (0, j)),
                ],
                out_specs=pl.BlockSpec((block_rows, bd), lambda i, j: (i, j)),
            ),
            compiler_params=pltpu.CompilerParams(
                dimension_semantics=("parallel", "parallel"),
                vmem_limit_bytes=vmem_limit_bytes,
            ),
        )(x2d, inv, g2d)

    if dim_p != dim:
        out2d = out2d[:, :dim]
    return out2d.reshape(orig_shape)


# ----------------------------------------------------------------------------
# Reference + tests
# ----------------------------------------------------------------------------
def _reference(x, gamma):
    dim = x.shape[-1]
    norm = jnp.sqrt(jnp.sum(x * x, axis=-1, keepdims=True))
    return x / jnp.maximum(norm, 1e-12) * (dim ** 0.5) * (gamma + 1.0)


if __name__ == "__main__":
    key = jax.random.PRNGKey(0)
    batch, seq, dim = 2, 8, 32
    kx, kb, k2, k3 = jax.random.split(key, 4)

    x = jax.random.normal(kx, (batch, seq, dim), dtype=jnp.float32)
    # nn.Parameter(torch.zeros(dim)) -> zeros, but perturb deterministically so
    # gamma actually participates in the check.
    gamma = 0.01 * jnp.arange(dim, dtype=jnp.float32)

    out = rmsnorm(x, gamma)
    jax.block_until_ready(out)
    ref = _reference(x, gamma)
    assert out.shape == x.shape and out.dtype == x.dtype
    assert jnp.allclose(out, ref, atol=1e-5, rtol=1e-5)

    # Ragged-edge sanity check: rows (=15) not a multiple of the row tile.
    x2 = jax.random.normal(k2, (3, 5, dim), dtype=jnp.float32)
    out2 = rmsnorm(x2, gamma)
    jax.block_until_ready(out2)
    assert jnp.allclose(out2, _reference(x2, gamma), atol=1e-5, rtol=1e-5)

    # Forced dim-split path (wide-row fallback), dim tiled at 128.
    dim3 = 256
    x3 = jax.random.normal(k3, (4, 10, dim3), dtype=jnp.float32)
    gamma3 = 0.01 * jnp.arange(dim3, dtype=jnp.float32) - 0.5
    out3 = rmsnorm(x3, gamma3, block_dim=128, block_rows=16)
    jax.block_until_ready(out3)
    assert jnp.allclose(out3, _reference(x3, gamma3), atol=1e-5, rtol=1e-5)

    # bf16 input: f32 compute inside the kernel, bf16 store.
    xb = jax.random.normal(kb, (2, 8, 128), dtype=jnp.bfloat16)
    gb = jnp.zeros((128,), dtype=jnp.float32)
    outb = rmsnorm(xb, gb)
    jax.block_until_ready(outb)
    refb = _reference(xb.astype(jnp.float32), gb)
    assert outb.dtype == jnp.bfloat16
    assert jnp.allclose(outb.astype(jnp.float32), refb, atol=2e-2, rtol=2e-2)

    print("KERNEL_OK")
</pallas_src>

<mosaic_0001>
module attributes {stable_mosaic.version = 11 : i64} {
  func.func @_rmsnorm_kernel(%arg0: i32, %arg1: memref<8x128xf32, #tpu.memory_space<vmem>>, %arg2: memref<1x128xf32, #tpu.memory_space<vmem>>, %arg3: memref<8x128xf32, #tpu.memory_space<vmem>>) attributes {dimension_semantics = [#tpu.dimension_semantics<parallel>], iteration_bounds = array<i64: 2>, scalar_prefetch = 0 : i64, scratch_operands = 0 : i64, tpu.core_type = #tpu.core_type<tc>, window_params = [{transform_indices = @transform_0, window_bounds = array<i64: 8, 128>}, {pipeline_mode = #tpu.pipeline_mode<synchronous>, transform_indices = @transform_1, window_bounds = array<i64: 1, 128>}, {transform_indices = @transform_2, window_bounds = array<i64: 8, 128>}]} {
    %c0 = arith.constant 0 : index
    %c0_0 = arith.constant 0 : index
    %0 = vector.load %arg1[%c0, %c0_0] : memref<8x128xf32, #tpu.memory_space<vmem>>, vector<8x128xf32>
    %c0_1 = arith.constant 0 : index
    %c0_2 = arith.constant 0 : index
    %1 = vector.load %arg2[%c0_1, %c0_2] : memref<1x128xf32, #tpu.memory_space<vmem>>, vector<1x128xf32>
    %2 = arith.mulf %0, %0 : vector<8x128xf32>
    %cst = arith.constant dense<0.000000e+00> : vector<8xf32>
    %3 = vector.multi_reduction <add>, %2, %cst [1] : vector<8x128xf32> to vector<8xf32>
    %4 = vector.shape_cast %3 : vector<8xf32> to vector<8x1xf32>
    %cst_3 = arith.constant 1.000000e-24 : f32
    %5 = vector.broadcast %cst_3 : f32 to vector<8x1xf32>
    %6 = arith.maximumf %4, %5 : vector<8x1xf32>
    %7 = math.rsqrt %6 : vector<8x1xf32>
    %8 = vector.broadcast %7 : vector<8x1xf32> to vector<8x128xf32>
    %9 = arith.mulf %0, %8 : vector<8x128xf32>
    %10 = vector.broadcast %1 : vector<1x128xf32> to vector<8x128xf32>
    %11 = arith.mulf %9, %10 : vector<8x128xf32>
    %c0_4 = arith.constant 0 : index
    %c0_5 = arith.constant 0 : index
    %12 = vector.load %arg3[%c0_4, %c0_5] : memref<8x128xf32, #tpu.memory_space<vmem>>, vector<8x128xf32>
    tpu.vector_store %arg3[%c0_4, %c0_5], %11 {strides = array<i32>} : memref<8x128xf32, #tpu.memory_space<vmem>>, vector<8x128xf32>,
    return
  }
  func.func @transform_0(%arg0: i32) -> (i32, i32) {
    %c0_i32 = arith.constant 0 : i32
    %c0_i32_0 = arith.constant 0 : i32
    return %arg0, %c0_i32 : i32, i32
  }
  func.func @transform_1(%arg0: i32) -> (i32, i32) {
    %c0_i32 = arith.constant 0 : i32
    %c0_i32_0 = arith.constant 0 : i32
    %c0_i32_1 = arith.constant 0 : i32
    return %c0_i32, %c0_i32_0 : i32, i32
  }
  func.func @transform_2(%arg0: i32) -> (i32, i32) {
    %c0_i32 = arith.constant 0 : i32
    %c0_i32_0 = arith.constant 0 : i32
    return %arg0, %c0_i32 : i32, i32
  }
}

</mosaic_0001>

<llo_original>
// kernel: tpu_custom_call.1
$region0: #{tpu_custom_call.1}
  #allocation0 [shape = 'u32[]', space=smem, size = 0x4, offset = 0x4, fixed_abs, tag = 'smem constant byte address 0x4 - core index']
  #allocation1 [shape = 'u32[144,128]{1,0:T(1,128)}', space=vmem, size = 0x12000, scoped, tag = 'internal scratch']
  %s0 = inlined_call_operand.hbm [shape: f32[16,128], index: 0, kind: input, shape index: {}]
  %s1 = inlined_call_operand.vmem [shape: f32[1,128], index: 1, kind: input, shape index: {}]
  %s2 = inlined_call_operand.hbm [shape: f32[16,128], index: 2, kind: output, shape index: {}]
  %s3 = sld [smem:[#allocation0]]
  $region45: #{tpu_custom_call.1} parent=0
    _
  %s5 = ssub.s32 1, %s3
  %s6 = scalar_select 0, %s5, %s3
  $region1: #{tpu_custom_call.1} parent=0
    #allocation2 [shape = 'u8[8192]{0}', space=vmem, size = 0x2000, scoped, tag = 'input window, operand 0']
    #allocation3 [shape = 's32[2]{0}', space=sflag, size = 0x8, scoped, tag = 'scoped memory for tpu_custom_call.1']
    #allocation4 [shape = 's32[2]{0}', space=sflag, size = 0x8, scoped, tag = 'scoped memory for tpu_custom_call.1']
    #allocation5 [shape = 'u8[8192]{0}', space=vmem, size = 0x2000, scoped, tag = 'output window, operand 0']
    %7 = vsyncpa [#allocation3], 0
    %s8 = scalar_lea.sflag [#allocation3], 1
    %9 = vsyncpa %s8, 0
    %10 = vsyncpa [#allocation4], 0
    %s11 = scalar_lea.sflag [#allocation4], 1
    %12 = vsyncpa %s11, 0
    loop: start=0, step=1, limit=4
    $region2: #{tpu_custom_call.1} parent=1 // loop_pre_header
      _
    $region3: #{tpu_custom_call.1} parent=1 // loop_header
      %s14 = sphi 0, %s18
      %p15 = scmp.ge.s32.totalorder %s14, 4
      %s24 = sphi 0, %s26
      %s27 = sphi 0, %s24
      %s28 = sphi 0, %s27
      %s44 = sphi 0, %s28
      %s48 = sphi 0, %s48
      %s50 = sphi 0, %s48
      %s51 = sphi 0, %s50
      %s65 = sphi 0, %s51
      %s71 = sphi 0, %s73
      %s74 = sphi 0, %s71
      %s75 = sphi 0, %s74
      %s91 = sphi 0, %s75
    $region4: #{tpu_custom_call.1} parent=1 // loop_header_branch
      %17 = sbr.rel (%p15) target = $region8
    $region5: #{tpu_custom_call.1} parent=1 // loop_body
      %s19 = ssub.s32 %s14, 1
      %s20 = ssub.s32 %s14, 2
      %s21 = sadd.s32 %s14, 1
      %s22 = ssub.s32 %s14, %s21
      %p23 = scmp.eq.s32.totalorder %s22, 0
      %s25 = sadd.s32 %s24, 1
      %s26 = scalar_select %p23, %s24, %s25
      %p29 = pneg %p23
      %p30 = scmp.eq.s32.totalorder %s14, 1
      %p31 = por %p29, %p30
      %p32 = scmp.ne.s32.totalorder %s24, %s27
      %p33 = scmp.eq.s32.totalorder %s14, 0
      %p34 = por %p32, %p33
      %p35 = scmp.ne.s32.totalorder %s24, %s27
      %p36 = scmp.eq.s32.totalorder %s19, 1
      %p37 = por %p35, %p36
      %p38 = scmp.ne.s32.totalorder %s27, %s28
      %p39 = scmp.eq.s32.totalorder %s19, 0
      %p40 = por %p38, %p39
      %p41 = scmp.ne.s32.totalorder %s27, %s28
      %p42 = scmp.eq.s32.totalorder %s20, 1
      %p43 = por %p41, %p42
      %p45 = scmp.ne.s32.totalorder %s28, %s44
      %p46 = scmp.eq.s32.totalorder %s20, 0
      %p47 = por %p45, %p46
      %s49 = sadd.s32 %s48, 1
      %p52 = scmp.eq.s32.totalorder %s14, 1
      %p53 = scmp.ne.s32.totalorder %s48, %s50
      %p54 = scmp.eq.s32.totalorder %s14, 0
      %p55 = por %p53, %p54
      %p56 = scmp.ne.s32.totalorder %s48, %s50
      %p57 = scmp.eq.s32.totalorder %s19, 1
      %p58 = por %p56, %p57
      %p59 = scmp.ne.s32.totalorder %s50, %s51
      %p60 = scmp.eq.s32.totalorder %s19, 0
      %p61 = por %p59, %p60
      %p62 = scmp.ne.s32.totalorder %s50, %s51
      %p63 = scmp.eq.s32.totalorder %s20, 1
      %p64 = por %p62, %p63
      %p66 = scmp.ne.s32.totalorder %s51, %s65
      %p67 = scmp.eq.s32.totalorder %s20, 0
      %p68 = por %p66, %p67
      %s69 = ssub.s32 %s14, %s21
      %p70 = scmp.eq.s32.totalorder %s69, 0
      %s72 = sadd.s32 %s71, 1
      %s73 = scalar_select %p70, %s71, %s72
      %p76 = pneg %p70
      %p77 = scmp.eq.s32.totalorder %s14, 1
      %p78 = por %p76, %p77
      %p79 = scmp.ne.s32.totalorder %s71, %s74
      %p80 = scmp.eq.s32.totalorder %s14, 0
      %p81 = por %p79, %p80
      %p82 = scmp.ne.s32.totalorder %s71, %s74
      %p83 = scmp.eq.s32.totalorder %s19, 1
      %p84 = por %p82, %p83
      %p85 = scmp.ne.s32.totalorder %s74, %s75
      %p86 = scmp.eq.s32.totalorder %s19, 0
      %p87 = por %p85, %p86
      %p88 = scmp.ne.s32.totalorder %s74, %s75
      %p89 = scmp.eq.s32.totalorder %s20, 1
      %p90 = por %p88, %p89
      %p92 = scmp.ne.s32.totalorder %s75, %s91
      %p93 = scmp.eq.s32.totalorder %s20, 0
      %p94 = por %p92, %p93
      %p95 = scmp.le.s32.totalorder 1, %s14
      %p96 = scmp.lt.s32.totalorder %s14, 3
      %p97 = pnand %p95, %p96
      %p98 = pneg %p97
      // Predicated region
      $region9: #{tpu_custom_call.1} parent=5 // pred_check
        _
      $region10: #{tpu_custom_call.1} parent=5 // pred_check_branch
        %100 = sbr.rel (%p97) target = $region12
      $region11: #{tpu_custom_call.1} parent=5 // pred_region
        %s101 = ssub.s32 %s14, 1
        // Predicated region
        $region13: #{tpu_custom_call.1} parent=11 // pred_check
          %p102 = pneg %p61
        $region14: #{tpu_custom_call.1} parent=11 // pred_check_branch
          %104 = sbr.rel (%p102) target = $region16
        $region15: #{tpu_custom_call.1} parent=11 // pred_region
          _
        $region16: #{tpu_custom_call.1} parent=11 // pred_fallthru
          _
      $region12: #{tpu_custom_call.1} parent=5 // pred_fallthru
        _
      %p105 = scmp.lt.s32.totalorder %s14, 2
      // Predicated region
      $region17: #{tpu_custom_call.1} parent=5 // pred_check
        %p106 = pneg %p105
      $region18: #{tpu_custom_call.1} parent=5 // pred_check_branch
        %108 = sbr.rel (%p106) target = $region20
      $region19: #{tpu_custom_call.1} parent=5 // pred_region
        // Predicated region
        $region21: #{tpu_custom_call.1} parent=19 // pred_check
          %p109 = pneg %p34
        $region22: #{tpu_custom_call.1} parent=19 // pred_check_branch
          %111 = sbr.rel (%p109) target = $region24
        $region23: #{tpu_custom_call.1} parent=19 // pred_region
          %s112 = sand.u32 %s24, 1
          %s113 = scalar_lea.sflag [#allocation3], %s112
          %s114 = sand.u32 %s24, 1
          %s115 = smul.addr %s114, 8
          %s116 = scalar_lea.vmem [#allocation2], %s115
          %s118 = ssub.s32 128, 128
          %119 = vsyncadd %s113, %s118
          %s120 = smul.addr %s14, 128
          %s121 = scalar_lea.hbm %s0, %s120
          %s123 = sshll.u32 %s116, 4
          %s124 = int_to_ptr.vmem [resolvable:$true] %s123
          %126 = dma.hbm_to_vmem [thread:$0]  %s121, 128, %s124, %s113
        $region24: #{tpu_custom_call.1} parent=19 // pred_fallthru
          _
      $region20: #{tpu_custom_call.1} parent=5 // pred_fallthru
        _
      %p127 = scmp.le.s32.totalorder 1, %s14
      %p128 = scmp.lt.s32.totalorder %s14, 3
      %p129 = pnand %p127, %p128
      %p130 = pneg %p129
      // Predicated region
      $region25: #{tpu_custom_call.1} parent=5 // pred_check
        _
      $region26: #{tpu_custom_call.1} parent=5 // pred_check_branch
        %132 = sbr.rel (%p129) target = $region28
      $region27: #{tpu_custom_call.1} parent=5 // pred_region
        %s133 = ssub.s32 %s14, 1
        %s134 = sand.u32 %s27, 1
        %s135 = scalar_lea.sflag [#allocation3], %s134
        %s136 = sand.u32 %s27, 1
        %s137 = smul.addr %s136, 8
        %s138 = scalar_lea.vmem [#allocation2], %s137
        // Predicated region
        $region29: #{tpu_custom_call.1} parent=27 // pred_check
          %p139 = pneg %p40
        $region30: #{tpu_custom_call.1} parent=27 // pred_check_branch
          %141 = sbr.rel (%p139) target = $region32
        $region31: #{tpu_custom_call.1} parent=27 // pred_region
          %142 = dma.done %s135, 128
        $region32: #{tpu_custom_call.1} parent=27 // pred_fallthru
          _
        %s143 = sand.u32 %s27, 1
        %s144 = scalar_lea.sflag [#allocation3], %s143
        %s145 = sand.u32 %s27, 1
        %s146 = smul.addr %s145, 8
        %s147 = scalar_lea.vmem [#allocation2], %s146
        %p148 = pneg %p40
        %p149 = pneg %p37
        %p150 = pneg %p61
        %p151 = pneg %p58
        %p152 = pneg %p87
        %p153 = pneg %p84
        %s154 = sand.u32 %s74, 1
        %s155 = scalar_lea.sflag [#allocation4], %s154
        %s156 = sand.u32 %s74, 1
        %s157 = smul.addr %s156, 8
        %s158 = scalar_lea.vmem [#allocation5], %s157
        %v159 = vld [vmem:[%s138] sm:$0xff]
        %v160 = vld [vmem:[%s1] sm:$0x1]
        %v161 = vmul.f32 %v159, %v159
        %162 = vadd.xlane.f32.xlu0 %v161
        %v163 = vpop.xlane.xlu0 %162
        %v164 = vmax.f32 %v163, 1e-24
        %v165 = vrsqrt.pop %v164
        %v166 = vmul.f32 %v159, %v165
        %v168 = vlaneseq
        %v169 = vshrl.u32 %v168, 7
        %v170 = vsub.s32 0, %v169
        %v171 = vrot.slane %v160, %v170
        %v173 = vmul.f32 %v166, %v171
        %174 = vst [vmem:[%s158] sm:$0xff] %v173
        %s175 = sand.u32 %s74, 1
        %s176 = scalar_lea.sflag [#allocation4], %s175
        %s177 = sand.u32 %s74, 1
        %s178 = smul.addr %s177, 8
        %s179 = scalar_lea.vmem [#allocation5], %s178
        // Predicated region
        $region33: #{tpu_custom_call.1} parent=27 // pred_check
          %p180 = pneg %p84
        $region34: #{tpu_custom_call.1} parent=27 // pred_check_branch
          %182 = sbr.rel (%p180) target = $region36
        $region35: #{tpu_custom_call.1} parent=27 // pred_region
          %s184 = ssub.s32 128, 128
          %185 = vsyncadd %s176, %s184
          %s186 = smul.addr %s19, 128
          %s187 = scalar_lea.hbm %s2, %s186
          %s189 = sshll.u32 %s179, 4
          %s190 = int_to_ptr.vmem [resolvable:$true] %s189
          %192 = dma.vmem_to_hbm [thread:$0]  %s190, 128, %s187, %s176
        $region36: #{tpu_custom_call.1} parent=27 // pred_fallthru
          _
      $region28: #{tpu_custom_call.1} parent=5 // pred_fallthru
        _
      %p193 = scmp.le.s32.totalorder 2, %s14
      // Predicated region
      $region37: #{tpu_custom_call.1} parent=5 // pred_check
        %p194 = pneg %p193
      $region38: #{tpu_custom_call.1} parent=5 // pred_check_branch
        %196 = sbr.rel (%p194) target = $region40
      $region39: #{tpu_custom_call.1} parent=5 // pred_region
        %s197 = ssub.s32 %s14, 2
        // Predicated region
        $region41: #{tpu_custom_call.1} parent=39 // pred_check
          %p198 = pneg %p90
        $region42: #{tpu_custom_call.1} parent=39 // pred_check_branch
          %200 = sbr.rel (%p198) target = $region44
        $region43: #{tpu_custom_call.1} parent=39 // pred_region
          %s201 = sand.u32 %s75, 1
          %s202 = scalar_lea.sflag [#allocation4], %s201
          %s203 = sand.u32 %s75, 1
          %s204 = smul.addr %s203, 8
          %s205 = scalar_lea.vmem [#allocation5], %s204
          %206 = dma.done %s202, 128
        $region44: #{tpu_custom_call.1} parent=39 // pred_fallthru
          _
      $region40: #{tpu_custom_call.1} parent=5 // pred_fallthru
        _
    $region6: #{tpu_custom_call.1} parent=1 // loop_footer
      %s18 = sadd.s32 1, %s14
    $region7: #{tpu_custom_call.1} parent=1 // loop_footer_branch
      %13 = sbr.rel target = $region3
    $region8: #{tpu_custom_call.1} parent=1 // loop_exit
      _
    %207 = vsyncpa [#allocation3], 1
    %s208 = scalar_lea.sflag [#allocation3], 1
    %209 = vsyncpa %s208, 1
    %210 = vsyncpa [#allocation4], 1
    %s211 = scalar_lea.sflag [#allocation4], 1
    %212 = vsyncpa %s211, 1

</llo_original>
